<compile_context>
chip_gen: v7x
topology: tpu7x:2x2x1
jax: 0.10.0
libtpu: 0.0.40
codegen_flags: <defaults>
</compile_context>

<pallas_src>
import jax
import jax.numpy as jnp
from jax.experimental import pallas as pl
from jax.experimental.pallas import tpu as pltpu


def _round_up(x, m):
    return ((x + m - 1) // m) * m


def ddg_readout_kernel(wt_ref, mut_ref, mask_ref,
                       w1t_ref, b1_ref,
                       w2t_ref, b2_ref,
                       w3t_ref, b3_ref,
                       wv_ref,
                       out_ref):
    f, tm = wt_ref.shape

    wt_t = wt_ref[...]            # (F, tm) bf16, residues on the lane axis
    mut_t = mut_ref[...]          # (F, tm) bf16

    # Branch stack along the lane axis:
    #   lanes [0:tm]   -> mlp(cat[wt, mut])
    #   lanes [tm:2tm] -> mlp(cat[mut, wt])
    # Layer 1 becomes a single K=2F matmul over both branches.
    a_t = jnp.concatenate([wt_t, mut_t], axis=0)     # (2F, tm)  == cat[wt,mut]^T
    b_t = jnp.concatenate([mut_t, wt_t], axis=0)     # (2F, tm)  == cat[mut,wt]^T
    x = jnp.concatenate([a_t, b_t], axis=1)          # (2F, 2*tm) bf16

    # Layer 1: W1^T @ X  (K = 2F = 64), f32 accumulation, f32 bias/ReLU on VPU.
    h = jnp.dot(w1t_ref[...], x, preferred_element_type=jnp.float32) + b1_ref[...]
    h = jnp.maximum(h, 0.0)
    # Layers 2 and 3 (Linear + ReLU), bf16 at the MXU, f32 epilogue.
    h = jnp.dot(w2t_ref[...], h.astype(jnp.bfloat16),
                preferred_element_type=jnp.float32) + b2_ref[...]
    h = jnp.maximum(h, 0.0)
    h = jnp.dot(w3t_ref[...], h.astype(jnp.bfloat16),
                preferred_element_type=jnp.float32) + b3_ref[...]
    h = jnp.maximum(h, 0.0)

    # Layer 4 + projection are folded into wv = w4 @ wp (b4 cancels in the
    # branch difference).  Everything here is lane-dense: (F, tm) diff,
    # sublane reduce to a (1, tm) row, full-lane unmasked store.
    diff_t = h[:, :tm] - h[:, tm:]                                  # (F, tm) f32
    per_res = jnp.sum(diff_t * wv_ref[...], axis=0, keepdims=True)  # (1, tm)
    out_ref[...] = per_res * mask_ref[...].astype(jnp.float32)


def ddg_readout(node_feat_wt, node_feat_mut, mask, params, *, tile_m=1024):
    """Pallas implementation of DDGReadout.forward with mode='reg'."""
    # TODO(synk): 'cla' / 'gau' heads (project_cla / project_gau) are not
    # implemented; only the mode='reg' path is translated.
    N, L, F = node_feat_wt.shape
    M = N * L

    if mask is None:
        mask = jnp.ones((N, L), jnp.float32)

    # ---- wrapper-side parameter prep (one-time, tiny) --------------------
    # Weights stored (in, out); the kernel computes W^T @ X, so pass W^T.
    w1t = params["w1"].T.astype(jnp.bfloat16)                      # (F, 2F)
    w2t = params["w2"].T.astype(jnp.bfloat16)                      # (F, F)
    w3t = params["w3"].T.astype(jnp.bfloat16)                      # (F, F)
    b1c = params["b1"].reshape(F, 1).astype(jnp.float32)
    b2c = params["b2"].reshape(F, 1).astype(jnp.float32)
    b3c = params["b3"].reshape(F, 1).astype(jnp.float32)
    # Fold layer 4 + projection (b4 cancels in the branch difference).
    wvc = (params["w4"] @ params["wp"]).astype(jnp.float32)        # (F, 1)

    # ---- tile size: multiple of 128 lanes, keep grid >= 2 when possible ---
    m128 = _round_up(max(M, 1), 128)
    tm = min(_round_up(tile_m, 128), m128)
    if m128 > 128:
        # Cap tm so the grid has at least 2 steps (v7x: 2 TensorCores).
        tm = min(tm, _round_up(pl.cdiv(m128, 2), 128))
    m_pad = _round_up(M, tm)
    grid = m_pad // tm

    # ---- inputs: one fused cast(bf16) + transpose + pad pass per array ----
    def prep(x):
        xt = x.reshape(M, F).astype(jnp.bfloat16).T                # (F, M)
        return jnp.pad(xt, ((0, 0), (0, m_pad - M)))               # (F, m_pad)

    wt_t = prep(node_feat_wt)
    mut_t = prep(node_feat_mut)
    mask_p = jnp.pad(mask.reshape(1, M).astype(jnp.bfloat16),
                     ((0, 0), (0, m_pad - M)))                     # (1, m_pad)

    feat_spec = pl.BlockSpec((F, tm), lambda i: (0, i))
    lane_spec = pl.BlockSpec((1, tm), lambda i: (0, i))
    w1_spec = pl.BlockSpec((F, 2 * F), lambda i: (0, 0))           # resident
    w_spec = pl.BlockSpec((F, F), lambda i: (0, 0))                # resident
    bias_spec = pl.BlockSpec((F, 1), lambda i: (0, 0))             # resident

    out = pl.pallas_call(
        ddg_readout_kernel,
        out_shape=jax.ShapeDtypeStruct((1, m_pad), jnp.float32),
        grid=(grid,),
        in_specs=[feat_spec, feat_spec, lane_spec,
                  w1_spec, bias_spec,
                  w_spec, bias_spec,
                  w_spec, bias_spec,
                  bias_spec],
        out_specs=lane_spec,
        compiler_params=pltpu.CompilerParams(
            dimension_semantics=("parallel",)),
    )(wt_t, mut_t, mask_p, w1t, b1c, w2t, b2c, w3t, b3c, wvc)

    # Drop padded rows and reduce over residues per protein (tiny XLA reduce).
    per_res = out[0, :M].reshape(N, L)
    return jnp.sum(per_res, axis=1)                                # (N,)


def init_params(key, feat_dim):
    """Synthetic params matching DDGReadout(feat_dim, 'reg'); stored (in, out)."""
    ks = jax.random.split(key, 9)
    F = feat_dim
    s = 0.1

    def lin(k, fin, fout):
        return s * jax.random.normal(k, (fin, fout), jnp.float32)

    return {
        "w1": lin(ks[0], 2 * F, F),
        "b1": s * jax.random.normal(ks[1], (F,), jnp.float32),
        "w2": lin(ks[2], F, F),
        "b2": s * jax.random.normal(ks[3], (F,), jnp.float32),
        "w3": lin(ks[4], F, F),
        "b3": s * jax.random.normal(ks[5], (F,), jnp.float32),
        "w4": lin(ks[6], F, F),
        "b4": s * jax.random.normal(ks[7], (F,), jnp.float32),
        "wp": lin(ks[8], F, 1),
    }


def ddg_readout_ref(node_feat_wt, node_feat_mut, mask, p):
    """Pure-JAX f32 reference mirroring the PyTorch forward (mode='reg')."""
    def mlp(x):
        h = jnp.maximum(x @ p["w1"] + p["b1"], 0.0)
        h = jnp.maximum(h @ p["w2"] + p["b2"], 0.0)
        h = jnp.maximum(h @ p["w3"] + p["b3"], 0.0)
        return h @ p["w4"] + p["b4"]

    feat_wm = jnp.concatenate([node_feat_wt, node_feat_mut], axis=-1)
    feat_mw = jnp.concatenate([node_feat_mut, node_feat_wt], axis=-1)
    feat_diff = mlp(feat_wm) - mlp(feat_mw)
    per_res = (feat_diff @ p["wp"])[..., 0]
    if mask is not None:
        per_res = per_res * mask
    return per_res.sum(axis=1)


if __name__ == "__main__":
    N, L, F = 2, 8, 32
    key = jax.random.PRNGKey(0)
    k_wt, k_mut, k_mask, k_params = jax.random.split(key, 4)

    node_feat_wt = jax.random.normal(k_wt, (N, L, F), jnp.float32)
    node_feat_mut = jax.random.normal(k_mut, (N, L, F), jnp.float32)
    mask = jax.random.bernoulli(k_mask, 0.8, (N, L)).astype(jnp.float32)

    params = init_params(k_params, F)

    ddg = ddg_readout(node_feat_wt, node_feat_mut, mask, params)
    jax.block_until_ready(ddg)

    ddg_ref = ddg_readout_ref(node_feat_wt, node_feat_mut, mask, params)
    assert ddg.shape == (N,)
    # Kernel uses bf16 MXU inputs with f32 accumulation; reference is pure f32.
    assert jnp.allclose(ddg, ddg_ref, atol=3e-2, rtol=3e-2), (ddg, ddg_ref)

    print("KERNEL_OK")
</pallas_src>

<mosaic_0001>
module attributes {stable_mosaic.version = 11 : i64} {
  func.func @ddg_readout_kernel(%arg0: i32, %arg1: memref<32x128xbf16, #tpu.memory_space<vmem>>, %arg2: memref<32x128xbf16, #tpu.memory_space<vmem>>, %arg3: memref<1x128xbf16, #tpu.memory_space<vmem>>, %arg4: memref<32x64xbf16, #tpu.memory_space<vmem>>, %arg5: memref<32x1xf32, #tpu.memory_space<vmem>>, %arg6: memref<32x32xbf16, #tpu.memory_space<vmem>>, %arg7: memref<32x1xf32, #tpu.memory_space<vmem>>, %arg8: memref<32x32xbf16, #tpu.memory_space<vmem>>, %arg9: memref<32x1xf32, #tpu.memory_space<vmem>>, %arg10: memref<32x1xf32, #tpu.memory_space<vmem>>, %arg11: memref<1x128xf32, #tpu.memory_space<vmem>>) attributes {dimension_semantics = [#tpu.dimension_semantics<parallel>], iteration_bounds = array<i64: 1>, scalar_prefetch = 0 : i64, scratch_operands = 0 : i64, tpu.core_type = #tpu.core_type<tc>, window_params = [{transform_indices = @transform_0, window_bounds = array<i64: 32, 128>}, {transform_indices = @transform_1, window_bounds = array<i64: 32, 128>}, {transform_indices = @transform_2, window_bounds = array<i64: 1, 128>}, {pipeline_mode = #tpu.pipeline_mode<synchronous>, transform_indices = @transform_3, window_bounds = array<i64: 32, 64>}, {pipeline_mode = #tpu.pipeline_mode<synchronous>, transform_indices = @transform_4, window_bounds = array<i64: 32, 1>}, {pipeline_mode = #tpu.pipeline_mode<synchronous>, transform_indices = @transform_5, window_bounds = array<i64: 32, 32>}, {pipeline_mode = #tpu.pipeline_mode<synchronous>, transform_indices = @transform_6, window_bounds = array<i64: 32, 1>}, {pipeline_mode = #tpu.pipeline_mode<synchronous>, transform_indices = @transform_7, window_bounds = array<i64: 32, 32>}, {pipeline_mode = #tpu.pipeline_mode<synchronous>, transform_indices = @transform_8, window_bounds = array<i64: 32, 1>}, {pipeline_mode = #tpu.pipeline_mode<synchronous>, transform_indices = @transform_9, window_bounds = array<i64: 32, 1>}, {transform_indices = @transform_10, window_bounds = array<i64: 1, 128>}]} {
    %c0 = arith.constant 0 : index
    %c0_0 = arith.constant 0 : index
    %0 = vector.load %arg1[%c0, %c0_0] : memref<32x128xbf16, #tpu.memory_space<vmem>>, vector<32x128xbf16>
    %c0_1 = arith.constant 0 : index
    %c0_2 = arith.constant 0 : index
    %1 = vector.load %arg2[%c0_1, %c0_2] : memref<32x128xbf16, #tpu.memory_space<vmem>>, vector<32x128xbf16>
    %2 = tpu.concatenate %0, %1 in 0 : vector<32x128xbf16>, vector<32x128xbf16> -> vector<64x128xbf16>
    %3 = tpu.concatenate %1, %0 in 0 : vector<32x128xbf16>, vector<32x128xbf16> -> vector<64x128xbf16>
    %4 = tpu.concatenate %2, %3 in 1 : vector<64x128xbf16>, vector<64x128xbf16> -> vector<64x256xbf16>
    %c0_3 = arith.constant 0 : index
    %c0_4 = arith.constant 0 : index
    %5 = vector.load %arg4[%c0_3, %c0_4] : memref<32x64xbf16, #tpu.memory_space<vmem>>, vector<32x64xbf16>
    %cst = arith.constant dense<0.000000e+00> : vector<32x256xf32>
    %6 = tpu.matmul %5, %4, %cst {dimension_numbers = #tpu.dot_dimension_numbers<[1], [0], [0], [1], [0, 0, 1, 1], [], []>} : vector<32x64xbf16>, vector<64x256xbf16>, vector<32x256xf32> -> vector<32x256xf32>
    %c0_5 = arith.constant 0 : index
    %c0_6 = arith.constant 0 : index
    %7 = vector.load %arg5[%c0_5, %c0_6] : memref<32x1xf32, #tpu.memory_space<vmem>>, vector<32x1xf32>
    %8 = vector.broadcast %7 : vector<32x1xf32> to vector<32x256xf32>
    %9 = arith.addf %6, %8 : vector<32x256xf32>
    %cst_7 = arith.constant 0.000000e+00 : f32
    %10 = vector.broadcast %cst_7 : f32 to vector<32x256xf32>
    %11 = arith.maximumf %9, %10 : vector<32x256xf32>
    %c0_8 = arith.constant 0 : index
    %c0_9 = arith.constant 0 : index
    %12 = vector.load %arg6[%c0_8, %c0_9] : memref<32x32xbf16, #tpu.memory_space<vmem>>, vector<32x32xbf16>
    %13 = arith.truncf %11 : vector<32x256xf32> to vector<32x256xbf16>
    %cst_10 = arith.constant dense<0.000000e+00> : vector<32x256xf32>
    %14 = tpu.matmul %12, %13, %cst_10 {dimension_numbers = #tpu.dot_dimension_numbers<[1], [0], [0], [1], [0, 0, 1, 1], [], []>} : vector<32x32xbf16>, vector<32x256xbf16>, vector<32x256xf32> -> vector<32x256xf32>
    %c0_11 = arith.constant 0 : index
    %c0_12 = arith.constant 0 : index
    %15 = vector.load %arg7[%c0_11, %c0_12] : memref<32x1xf32, #tpu.memory_space<vmem>>, vector<32x1xf32>
    %16 = vector.broadcast %15 : vector<32x1xf32> to vector<32x256xf32>
    %17 = arith.addf %14, %16 : vector<32x256xf32>
    %cst_13 = arith.constant 0.000000e+00 : f32
    %18 = vector.broadcast %cst_13 : f32 to vector<32x256xf32>
    %19 = arith.maximumf %17, %18 : vector<32x256xf32>
    %c0_14 = arith.constant 0 : index
    %c0_15 = arith.constant 0 : index
    %20 = vector.load %arg8[%c0_14, %c0_15] : memref<32x32xbf16, #tpu.memory_space<vmem>>, vector<32x32xbf16>
    %21 = arith.truncf %19 : vector<32x256xf32> to vector<32x256xbf16>
    %cst_16 = arith.constant dense<0.000000e+00> : vector<32x256xf32>
    %22 = tpu.matmul %20, %21, %cst_16 {dimension_numbers = #tpu.dot_dimension_numbers<[1], [0], [0], [1], [0, 0, 1, 1], [], []>} : vector<32x32xbf16>, vector<32x256xbf16>, vector<32x256xf32> -> vector<32x256xf32>
    %c0_17 = arith.constant 0 : index
    %c0_18 = arith.constant 0 : index
    %23 = vector.load %arg9[%c0_17, %c0_18] : memref<32x1xf32, #tpu.memory_space<vmem>>, vector<32x1xf32>
    %24 = vector.broadcast %23 : vector<32x1xf32> to vector<32x256xf32>
    %25 = arith.addf %22, %24 : vector<32x256xf32>
    %cst_19 = arith.constant 0.000000e+00 : f32
    %26 = vector.broadcast %cst_19 : f32 to vector<32x256xf32>
    %27 = arith.maximumf %25, %26 : vector<32x256xf32>
    %28 = vector.extract_strided_slice %27 {offsets = [0, 0], sizes = [32, 128], strides = [1, 1]} : vector<32x256xf32> to vector<32x128xf32>
    %29 = vector.extract_strided_slice %27 {offsets = [0, 128], sizes = [32, 128], strides = [1, 1]} : vector<32x256xf32> to vector<32x128xf32>
    %30 = arith.subf %28, %29 : vector<32x128xf32>
    %c0_20 = arith.constant 0 : index
    %c0_21 = arith.constant 0 : index
    %31 = vector.load %arg10[%c0_20, %c0_21] : memref<32x1xf32, #tpu.memory_space<vmem>>, vector<32x1xf32>
    %32 = vector.broadcast %31 : vector<32x1xf32> to vector<32x128xf32>
    %33 = arith.mulf %30, %32 : vector<32x128xf32>
    %cst_22 = arith.constant dense<0.000000e+00> : vector<128xf32>
    %34 = vector.multi_reduction <add>, %33, %cst_22 [0] : vector<32x128xf32> to vector<128xf32>
    %35 = vector.shape_cast %34 : vector<128xf32> to vector<1x128xf32>
    %c0_23 = arith.constant 0 : index
    %c0_24 = arith.constant 0 : index
    %36 = vector.load %arg3[%c0_23, %c0_24] : memref<1x128xbf16, #tpu.memory_space<vmem>>, vector<1x128xbf16>
    %37 = arith.extf %36 : vector<1x128xbf16> to vector<1x128xf32>
    %38 = arith.mulf %35, %37 : vector<1x128xf32>
    %c0_25 = arith.constant 0 : index
    %c0_26 = arith.constant 0 : index
    %39 = vector.load %arg11[%c0_25, %c0_26] : memref<1x128xf32, #tpu.memory_space<vmem>>, vector<1x128xf32>
    tpu.vector_store %arg11[%c0_25, %c0_26], %38 {strides = array<i32>} : memref<1x128xf32, #tpu.memory_space<vmem>>, vector<1x128xf32>,
    return
  }
  func.func @transform_0(%arg0: i32) -> (i32, i32) {
    %c0_i32 = arith.constant 0 : i32
    %c0_i32_0 = arith.constant 0 : i32
    return %c0_i32, %arg0 : i32, i32
  }
  func.func @transform_1(%arg0: i32) -> (i32, i32) {
    %c0_i32 = arith.constant 0 : i32
    %c0_i32_0 = arith.constant 0 : i32
    return %c0_i32, %arg0 : i32, i32
  }
  func.func @transform_2(%arg0: i32) -> (i32, i32) {
    %c0_i32 = arith.constant 0 : i32
    %c0_i32_0 = arith.constant 0 : i32
    return %c0_i32, %arg0 : i32, i32
  }
  func.func @transform_3(%arg0: i32) -> (i32, i32) {
    %c0_i32 = arith.constant 0 : i32
    %c0_i32_0 = arith.constant 0 : i32
    %c0_i32_1 = arith.constant 0 : i32
    return %c0_i32, %c0_i32_0 : i32, i32
  }
  func.func @transform_4(%arg0: i32) -> (i32, i32) {
    %c0_i32 = arith.constant 0 : i32
    %c0_i32_0 = arith.constant 0 : i32
    %c0_i32_1 = arith.constant 0 : i32
    return %c0_i32, %c0_i32_0 : i32, i32
  }
  func.func @transform_5(%arg0: i32) -> (i32, i32) {
    %c0_i32 = arith.constant 0 : i32
    %c0_i32_0 = arith.constant 0 : i32
    %c0_i32_1 = arith.constant 0 : i32
    return %c0_i32, %c0_i32_0 : i32, i32
  }
  func.func @transform_6(%arg0: i32) -> (i32, i32) {
    %c0_i32 = arith.constant 0 : i32
    %c0_i32_0 = arith.constant 0 : i32
    %c0_i32_1 = arith.constant 0 : i32
    return %c0_i32, %c0_i32_0 : i32, i32
  }
  func.func @transform_7(%arg0: i32) -> (i32, i32) {
    %c0_i32 = arith.constant 0 : i32
    %c0_i32_0 = arith.constant 0 : i32
    %c0_i32_1 = arith.constant 0 : i32
    return %c0_i32, %c0_i32_0 : i32, i32
  }
  func.func @transform_8(%arg0: i32) -> (i32, i32) {
    %c0_i32 = arith.constant 0 : i32
    %c0_i32_0 = arith.constant 0 : i32
    %c0_i32_1 = arith.constant 0 : i32
    return %c0_i32, %c0_i32_0 : i32, i32
  }
  func.func @transform_9(%arg0: i32) -> (i32, i32) {
    %c0_i32 = arith.constant 0 : i32
    %c0_i32_0 = arith.constant 0 : i32
    %c0_i32_1 = arith.constant 0 : i32
    return %c0_i32, %c0_i32_0 : i32, i32
  }
  func.func @transform_10(%arg0: i32) -> (i32, i32) {
    %c0_i32 = arith.constant 0 : i32
    %c0_i32_0 = arith.constant 0 : i32
    return %c0_i32, %arg0 : i32, i32
  }
}

</mosaic_0001>

<llo_original>
// kernel: tpu_custom_call.1
$region0: #{tpu_custom_call.1}
  #allocation0 [shape = 'u32[]', space=smem, size = 0x4, offset = 0x4, fixed_abs, tag = 'smem constant byte address 0x4 - core index']
  #allocation1 [shape = 'u32[144,128]{1,0:T(1,128)}', space=vmem, size = 0x12000, scoped, tag = 'internal scratch']
  %s0 = inlined_call_operand.vmem [shape: bf16[32,128], index: 0, kind: input, shape index: {}]
  %s1 = inlined_call_operand.vmem [shape: bf16[32,128], index: 1, kind: input, shape index: {}]
  %s2 = inlined_call_operand.vmem [shape: bf16[1,128], index: 2, kind: input, shape index: {}]
  %s3 = inlined_call_operand.vmem [shape: bf16[32,64], index: 3, kind: input, shape index: {}]
  %s4 = inlined_call_operand.vmem [shape: f32[32,1], index: 4, kind: input, shape index: {}]
  %s5 = inlined_call_operand.vmem [shape: bf16[32,32], index: 5, kind: input, shape index: {}]
  %s6 = inlined_call_operand.vmem [shape: f32[32,1], index: 6, kind: input, shape index: {}]
  %s7 = inlined_call_operand.vmem [shape: bf16[32,32], index: 7, kind: input, shape index: {}]
  %s8 = inlined_call_operand.vmem [shape: f32[32,1], index: 8, kind: input, shape index: {}]
  %s9 = inlined_call_operand.vmem [shape: f32[32,1], index: 9, kind: input, shape index: {}]
  %s10 = inlined_call_operand.hbm [shape: f32[1,128], index: 10, kind: output, shape index: {}]
  %s11 = sld [smem:[#allocation0]]
  $region50: #{tpu_custom_call.1} parent=0
    _
  %s13 = ssub.s32 1, %s11
  %s14 = scalar_select 0, %s13, %s11
  $region1: #{tpu_custom_call.1} parent=0
    #allocation2 [shape = 'u8[512]{0}', space=vmem, size = 0x400, scoped, tag = 'output window, operand 0, single buffered']
    #allocation3 [shape = 's32[1]{0}', space=sflag, size = 0x4, scoped, tag = 'scoped memory for tpu_custom_call.1']
    %15 = vsyncpa [#allocation3], 0
    // Predicated region
    $region2: #{tpu_custom_call.1} parent=1 // pred_check
      _
    $region3: #{tpu_custom_call.1} parent=1 // pred_check_branch
      %17 = sbr.rel (0) target = $region5
    $region4: #{tpu_custom_call.1} parent=1 // pred_region
      _
    $region5: #{tpu_custom_call.1} parent=1 // pred_fallthru
      _
    // Predicated region
    $region6: #{tpu_custom_call.1} parent=1 // pred_check
      _
    $region7: #{tpu_custom_call.1} parent=1 // pred_check_branch
      %19 = sbr.rel (0) target = $region9
    $region8: #{tpu_custom_call.1} parent=1 // pred_region
      _
    $region9: #{tpu_custom_call.1} parent=1 // pred_fallthru
      _
    // Predicated region
    $region10: #{tpu_custom_call.1} parent=1 // pred_check
      _
    $region11: #{tpu_custom_call.1} parent=1 // pred_check_branch
      %21 = sbr.rel (0) target = $region13
    $region12: #{tpu_custom_call.1} parent=1 // pred_region
      _
    $region13: #{tpu_custom_call.1} parent=1 // pred_fallthru
      _
    // Predicated region
    $region14: #{tpu_custom_call.1} parent=1 // pred_check
      _
    $region15: #{tpu_custom_call.1} parent=1 // pred_check_branch
      %23 = sbr.rel (0) target = $region17
    $region16: #{tpu_custom_call.1} parent=1 // pred_region
      _
    $region17: #{tpu_custom_call.1} parent=1 // pred_fallthru
      _
    // Predicated region
    $region18: #{tpu_custom_call.1} parent=1 // pred_check
      _
    $region19: #{tpu_custom_call.1} parent=1 // pred_check_branch
      %25 = sbr.rel (0) target = $region21
    $region20: #{tpu_custom_call.1} parent=1 // pred_region
      _
    $region21: #{tpu_custom_call.1} parent=1 // pred_fallthru
      _
    // Predicated region
    $region22: #{tpu_custom_call.1} parent=1 // pred_check
      _
    $region23: #{tpu_custom_call.1} parent=1 // pred_check_branch
      %27 = sbr.rel (0) target = $region25
    $region24: #{tpu_custom_call.1} parent=1 // pred_region
      _
    $region25: #{tpu_custom_call.1} parent=1 // pred_fallthru
      _
    // Predicated region
    $region26: #{tpu_custom_call.1} parent=1 // pred_check
      _
    $region27: #{tpu_custom_call.1} parent=1 // pred_check_branch
      %29 = sbr.rel (0) target = $region29
    $region28: #{tpu_custom_call.1} parent=1 // pred_region
      _
    $region29: #{tpu_custom_call.1} parent=1 // pred_fallthru
      _
    // Predicated region
    $region30: #{tpu_custom_call.1} parent=1 // pred_check
      _
    $region31: #{tpu_custom_call.1} parent=1 // pred_check_branch
      %31 = sbr.rel (0) target = $region33
    $region32: #{tpu_custom_call.1} parent=1 // pred_region
      _
    $region33: #{tpu_custom_call.1} parent=1 // pred_fallthru
      _
    // Predicated region
    $region34: #{tpu_custom_call.1} parent=1 // pred_check
      _
    $region35: #{tpu_custom_call.1} parent=1 // pred_check_branch
      %33 = sbr.rel (0) target = $region37
    $region36: #{tpu_custom_call.1} parent=1 // pred_region
      _
    $region37: #{tpu_custom_call.1} parent=1 // pred_fallthru
      _
    // Predicated region
    $region38: #{tpu_custom_call.1} parent=1 // pred_check
      _
    $region39: #{tpu_custom_call.1} parent=1 // pred_check_branch
      %35 = sbr.rel (0) target = $region41
    $region40: #{tpu_custom_call.1} parent=1 // pred_region
      _
    $region41: #{tpu_custom_call.1} parent=1 // pred_fallthru
      _
    %v37 = vld [vmem:[%s0] sm:$0xf]
    %v38 = vld [vmem:[%s0 + $0x4] sm:$0xf]
    %v39 = vld [vmem:[%s0 + $0x8] sm:$0xf]
    %v40 = vld [vmem:[%s0 + $0xc] sm:$0xf]
    %v41 = vld [vmem:[%s1] sm:$0xf]
    %v42 = vld [vmem:[%s1 + $0x4] sm:$0xf]
    %v43 = vld [vmem:[%s1 + $0x8] sm:$0xf]
    %v44 = vld [vmem:[%s1 + $0xc] sm:$0xf]
    %v49 = vunpack.c.l.b16 %v37
    %v50 = vunpack.c.l.b16 %v38
    %v51 = vunpack.c.l.b16 %v39
    %v52 = vunpack.c.l.b16 %v40
    %v53 = vpack.c.b16 %v50, %v49
    %v54 = vpack.c.b16 %v52, %v51
    %v61 = vunpack.c.l.b16 %v41
    %v62 = vunpack.c.l.b16 %v42
    %v63 = vunpack.c.l.b16 %v43
    %v64 = vunpack.c.l.b16 %v44
    %v65 = vpack.c.b16 %v62, %v61
    %v66 = vpack.c.b16 %v64, %v63
    %v69 = vld [vmem:[%s3] sm:$0xf]
    %v70 = vld [vmem:[%s3 + $0x4] sm:$0xf]
    %v71 = vld [vmem:[%s3 + $0x8] sm:$0xf]
    %v72 = vld [vmem:[%s3 + $0xc] sm:$0xf]
    %v73 = vld [vmem:[%s4] sm:$0xff]
    %v74 = vld [vmem:[%s4 + $0x8] sm:$0xff]
    %v75 = vld [vmem:[%s4 + $0x10] sm:$0xff]
    %v76 = vld [vmem:[%s4 + $0x18] sm:$0xff]
    %78 = vset.pattern.permute.xlu0 0
    %79 = vperm.xlu0 %78, %v73
    %v80 = vpop.permute.xlu0 %79
    %83 = vset.pattern.permute.xlu0 0
    %84 = vperm.xlu0 %83, %v74
    %v85 = vpop.permute.xlu0 %84
    %88 = vset.pattern.permute.xlu0 0
    %89 = vperm.xlu0 %88, %v75
    %v90 = vpop.permute.xlu0 %89
    %93 = vset.pattern.permute.xlu0 0
    %94 = vperm.xlu0 %93, %v76
    %v95 = vpop.permute.xlu0 %94
    %v101 = vunpack.c.l.b16 %v69
    %v102 = vunpack.c.l.b16 %v70
    %v103 = vunpack.c.l.b16 %v71
    %v104 = vunpack.c.l.b16 %v72
    %v105 = vpack.c.b16 %v102, %v101
    %v106 = vpack.c.b16 %v104, %v103
    %vm107 = vcmask 523264
    %v109 = vsel %vm107, %v105, 0
    %v112 = vsel %vm107, %v106, 0
    %114 = vmatprep.subr.bf16.mxu0 %v65
    %115 = vmatpush1.bf16.msra.mxu0 %v53
    %116 = vmatprep.subr.bf16.mxu0 %v66
    %117 = vmatpush1.bf16.msra.mxu0 %v54
    %118 = vmatprep.subr.bf16.mxu0 %v53
    %119 = vmatpush1.bf16.msra.mxu0 %v65
    %120 = vmatprep.subr.bf16.mxu0 %v54
    %121 = vmatpush1.bf16.msra.mxu0 %v66
    %122 = vmatprep.subr.bf16.mxu0 0
    %123 = vmatpush1.bf16.msra.mxu0 0
    %124 = vmatprep.subr.bf16.mxu0 0
    %125 = vmatpush1.bf16.msra.mxu0 0
    %126 = vmatprep.subr.bf16.mxu0 0
    %127 = vmatpush1.bf16.msra.mxu0 0
    %128 = vmatprep.subr.bf16.mxu0 0
    %129 = vmatpush1.bf16.msra.mxu0 0
    %130 = vmatprep.subr.bf16.mxu0 0
    %131 = vmatpush1.bf16.msra.mxu0 0
    %132 = vmatprep.subr.bf16.mxu0 0
    %133 = vmatpush1.bf16.msra.mxu0 0
    %134 = vmatprep.subr.bf16.mxu0 0
    %135 = vmatpush1.bf16.msra.mxu0 0
    %136 = vmatprep.subr.bf16.mxu0 0
    %137 = vmatpush1.bf16.msra.mxu0 0
    %138 = vmatprep.subr.bf16.mxu0 0
    %139 = vmatpush1.bf16.msra.mxu0 0
    %140 = vmatprep.subr.bf16.mxu0 0
    %141 = vmatpush1.bf16.msra.mxu0 0
    %142 = vmatprep.subr.bf16.mxu0 0
    %143 = vmatpush1.bf16.msra.mxu0 0
    %144 = vmatprep.subr.bf16.mxu0 0
    %145 = vmatpush1.bf16.msra.mxu0 0
    %146 = vmatprep.mubr.bf16.mxu0 0
    %147 = vmatmul.mubr.bf16.gmra.mrb[0].mxu0 %v109
    %v148 = vpop.f32.mrb[0].mxu0
    %v149 = vadd.f32 %v80, %v148
    %v150 = vpop.f32.mrb[0].mxu0
    %v151 = vadd.f32 %v80, %v150
    %v152 = vpop.f32.mrb[0].mxu0
    %v153 = vadd.f32 %v85, %v152
    %v154 = vpop.f32.mrb[0].mxu0
    %v155 = vadd.f32 %v85, %v154
    %156 = vmatprep.mubr.bf16.mxu0 0
    %157 = vmatmul.mubr.bf16.gmra.mrb[0].mxu0 %v112
    %v158 = vpop.f32.mrb[0].mxu0
    %v159 = vadd.f32 %v90, %v158
    %v160 = vpop.f32.mrb[0].mxu0
    %v161 = vadd.f32 %v90, %v160
    %v162 = vpop.f32.mrb[0].mxu0
    %v163 = vadd.f32 %v95, %v162
    %v164 = vpop.f32.mrb[0].mxu0
    %v165 = vadd.f32 %v95, %v164
    %166 = vdwg.mxu0
    %v167 = vmax.f32 %v149, 0.0
    %v168 = vmax.f32 %v151, 0.0
    %v169 = vmax.f32 %v153, 0.0
    %v170 = vmax.f32 %v155, 0.0
    %v171 = vmax.f32 %v159, 0.0
    %v172 = vmax.f32 %v161, 0.0
    %v173 = vmax.f32 %v163, 0.0
    %v174 = vmax.f32 %v165, 0.0
    %v175 = vld [vmem:[%s5] sm:$0xf]
    %v176 = vld [vmem:[%s5 + $0x4] sm:$0xf]
    %v177 = vld [vmem:[%s5 + $0x8] sm:$0xf]
    %v178 = vld [vmem:[%s5 + $0xc] sm:$0xf]
    %v179 = vpack.c.bf16 %v169, %v167
    %v180 = vpack.c.bf16 %v170, %v168
    %v181 = vpack.c.bf16 %v173, %v171
    %v182 = vpack.c.bf16 %v174, %v172
    %v183 = vld [vmem:[%s6] sm:$0xff]
    %v184 = vld [vmem:[%s6 + $0x8] sm:$0xff]
    %v185 = vld [vmem:[%s6 + $0x10] sm:$0xff]
    %v186 = vld [vmem:[%s6 + $0x18] sm:$0xff]
    %188 = vset.pattern.permute.xlu0 0
    %189 = vperm.xlu0 %188, %v183
    %v190 = vpop.permute.xlu0 %189
    %193 = vset.pattern.permute.xlu0 0
    %194 = vperm.xlu0 %193, %v184
    %v195 = vpop.permute.xlu0 %194
    %198 = vset.pattern.permute.xlu0 0
    %199 = vperm.xlu0 %198, %v185
    %v200 = vpop.permute.xlu0 %199
    %203 = vset.pattern.permute.xlu0 0
    %204 = vperm.xlu0 %203, %v186
    %v205 = vpop.permute.xlu0 %204
    %v211 = vunpack.c.l.b16 %v175
    %v212 = vunpack.c.l.b16 %v176
    %v213 = vunpack.c.l.b16 %v177
    %v214 = vunpack.c.l.b16 %v178
    %v215 = vpack.c.b16 %v212, %v211
    %v216 = vpack.c.b16 %v214, %v213
    %vm217 = vcmask 261120
    %v219 = vsel %vm217, %v215, 0
    %v222 = vsel %vm217, %v216, 0
    %224 = vmatprep.subr.bf16.mxu0 %v180
    %225 = vmatpush1.bf16.msra.mxu0 %v179
    %226 = vmatprep.subr.bf16.mxu0 %v182
    %227 = vmatpush1.bf16.msra.mxu0 %v181
    %228 = vmatprep.subr.bf16.mxu0 0
    %229 = vmatpush1.bf16.msra.mxu0 0
    %230 = vmatprep.subr.bf16.mxu0 0
    %231 = vmatpush1.bf16.msra.mxu0 0
    %232 = vmatprep.subr.bf16.mxu0 0
    %233 = vmatpush1.bf16.msra.mxu0 0
    %234 = vmatprep.subr.bf16.mxu0 0
    %235 = vmatpush1.bf16.msra.mxu0 0
    %236 = vmatprep.subr.bf16.mxu0 0
    %237 = vmatpush1.bf16.msra.mxu0 0
    %238 = vmatprep.subr.bf16.mxu0 0
    %239 = vmatpush1.bf16.msra.mxu0 0
    %240 = vmatprep.subr.bf16.mxu0 0
    %241 = vmatpush1.bf16.msra.mxu0 0
    %242 = vmatprep.subr.bf16.mxu0 0
    %243 = vmatpush1.bf16.msra.mxu0 0
    %244 = vmatprep.subr.bf16.mxu0 0
    %245 = vmatpush1.bf16.msra.mxu0 0
    %246 = vmatprep.subr.bf16.mxu0 0
    %247 = vmatpush1.bf16.msra.mxu0 0
    %248 = vmatprep.subr.bf16.mxu0 0
    %249 = vmatpush1.bf16.msra.mxu0 0
    %250 = vmatprep.subr.bf16.mxu0 0
    %251 = vmatpush1.bf16.msra.mxu0 0
    %252 = vmatprep.subr.bf16.mxu0 0
    %253 = vmatpush1.bf16.msra.mxu0 0
    %254 = vmatprep.subr.bf16.mxu0 0
    %255 = vmatpush1.bf16.msra.mxu0 0
    %256 = vmatprep.mubr.bf16.mxu0 0
    %257 = vmatmul.mubr.bf16.gmra.mrb[0].mxu0 %v219
    %v258 = vpop.f32.mrb[0].mxu0
    %v259 = vadd.f32 %v190, %v258
    %v260 = vpop.f32.mrb[0].mxu0
    %v261 = vadd.f32 %v190, %v260
    %v262 = vpop.f32.mrb[0].mxu0
    %v263 = vadd.f32 %v195, %v262
    %v264 = vpop.f32.mrb[0].mxu0
    %v265 = vadd.f32 %v195, %v264
    %266 = vmatprep.mubr.bf16.mxu0 0
    %267 = vmatmul.mubr.bf16.gmra.mrb[0].mxu0 %v222
    %v268 = vpop.f32.mrb[0].mxu0
    %v269 = vadd.f32 %v200, %v268
    %v270 = vpop.f32.mrb[0].mxu0
    %v271 = vadd.f32 %v200, %v270
    %v272 = vpop.f32.mrb[0].mxu0
    %v273 = vadd.f32 %v205, %v272
    %v274 = vpop.f32.mrb[0].mxu0
    %v275 = vadd.f32 %v205, %v274
    %276 = vdwg.mxu0
    %v277 = vmax.f32 %v259, 0.0
    %v278 = vmax.f32 %v261, 0.0
    %v279 = vmax.f32 %v263, 0.0
    %v280 = vmax.f32 %v265, 0.0
    %v281 = vmax.f32 %v269, 0.0
    %v282 = vmax.f32 %v271, 0.0
    %v283 = vmax.f32 %v273, 0.0
    %v284 = vmax.f32 %v275, 0.0
    %v285 = vld [vmem:[%s7] sm:$0xf]
    %v286 = vld [vmem:[%s7 + $0x4] sm:$0xf]
    %v287 = vld [vmem:[%s7 + $0x8] sm:$0xf]
    %v288 = vld [vmem:[%s7 + $0xc] sm:$0xf]
    %v289 = vpack.c.bf16 %v279, %v277
    %v290 = vpack.c.bf16 %v280, %v278
    %v291 = vpack.c.bf16 %v283, %v281
    %v292 = vpack.c.bf16 %v284, %v282
    %v293 = vld [vmem:[%s8] sm:$0xff]
    %v294 = vld [vmem:[%s8 + $0x8] sm:$0xff]
    %v295 = vld [vmem:[%s8 + $0x10] sm:$0xff]
    %v296 = vld [vmem:[%s8 + $0x18] sm:$0xff]
    %298 = vset.pattern.permute.xlu0 0
    %299 = vperm.xlu0 %298, %v293
    %v300 = vpop.permute.xlu0 %299
    %303 = vset.pattern.permute.xlu0 0
    %304 = vperm.xlu0 %303, %v294
    %v305 = vpop.permute.xlu0 %304
    %308 = vset.pattern.permute.xlu0 0
    %309 = vperm.xlu0 %308, %v295
    %v310 = vpop.permute.xlu0 %309
    %313 = vset.pattern.permute.xlu0 0
    %314 = vperm.xlu0 %313, %v296
    %v315 = vpop.permute.xlu0 %314
    %v321 = vunpack.c.l.b16 %v285
    %v322 = vunpack.c.l.b16 %v286
    %v323 = vunpack.c.l.b16 %v287
    %v324 = vunpack.c.l.b16 %v288
    %v325 = vpack.c.b16 %v322, %v321
    %v326 = vpack.c.b16 %v324, %v323
    %v328 = vsel %vm217, %v325, 0
    %v331 = vsel %vm217, %v326, 0
    %333 = vmatprep.subr.bf16.mxu0 %v290
    %334 = vmatpush1.bf16.msra.mxu0 %v289
    %335 = vmatprep.subr.bf16.mxu0 %v292
    %336 = vmatpush1.bf16.msra.mxu0 %v291
    %337 = vmatprep.subr.bf16.mxu0 0
    %338 = vmatpush1.bf16.msra.mxu0 0
    %339 = vmatprep.subr.bf16.mxu0 0
    %340 = vmatpush1.bf16.msra.mxu0 0
    %341 = vmatprep.subr.bf16.mxu0 0
    %342 = vmatpush1.bf16.msra.mxu0 0
    %343 = vmatprep.subr.bf16.mxu0 0
    %344 = vmatpush1.bf16.msra.mxu0 0
    %345 = vmatprep.subr.bf16.mxu0 0
    %346 = vmatpush1.bf16.msra.mxu0 0
    %347 = vmatprep.subr.bf16.mxu0 0
    %348 = vmatpush1.bf16.msra.mxu0 0
    %349 = vmatprep.subr.bf16.mxu0 0
    %350 = vmatpush1.bf16.msra.mxu0 0
    %351 = vmatprep.subr.bf16.mxu0 0
    %352 = vmatpush1.bf16.msra.mxu0 0
    %353 = vmatprep.subr.bf16.mxu0 0
    %354 = vmatpush1.bf16.msra.mxu0 0
    %355 = vmatprep.subr.bf16.mxu0 0
    %356 = vmatpush1.bf16.msra.mxu0 0
    %357 = vmatprep.subr.bf16.mxu0 0
    %358 = vmatpush1.bf16.msra.mxu0 0
    %359 = vmatprep.subr.bf16.mxu0 0
    %360 = vmatpush1.bf16.msra.mxu0 0
    %361 = vmatprep.subr.bf16.mxu0 0
    %362 = vmatpush1.bf16.msra.mxu0 0
    %363 = vmatprep.subr.bf16.mxu0 0
    %364 = vmatpush1.bf16.msra.mxu0 0
    %365 = vmatprep.mubr.bf16.mxu0 0
    %366 = vmatmul.mubr.bf16.gmra.mrb[0].mxu0 %v328
    %v367 = vpop.f32.mrb[0].mxu0
    %v368 = vadd.f32 %v300, %v367
    %v369 = vpop.f32.mrb[0].mxu0
    %v370 = vadd.f32 %v300, %v369
    %v371 = vpop.f32.mrb[0].mxu0
    %v372 = vadd.f32 %v305, %v371
    %v373 = vpop.f32.mrb[0].mxu0
    %v374 = vadd.f32 %v305, %v373
    %375 = vmatprep.mubr.bf16.mxu0 0
    %376 = vmatmul.mubr.bf16.gmra.mrb[0].mxu0 %v331
    %v377 = vpop.f32.mrb[0].mxu0
    %v378 = vadd.f32 %v310, %v377
    %v379 = vpop.f32.mrb[0].mxu0
    %v380 = vadd.f32 %v310, %v379
    %v381 = vpop.f32.mrb[0].mxu0
    %v382 = vadd.f32 %v315, %v381
    %v383 = vpop.f32.mrb[0].mxu0
    %v384 = vadd.f32 %v315, %v383
    %385 = vdwg.mxu0
    %v386 = vmax.f32 %v368, 0.0
    %v387 = vmax.f32 %v370, 0.0
    %v388 = vmax.f32 %v372, 0.0
    %v389 = vmax.f32 %v374, 0.0
    %v390 = vmax.f32 %v378, 0.0
    %v391 = vmax.f32 %v380, 0.0
    %v392 = vmax.f32 %v382, 0.0
    %v393 = vmax.f32 %v384, 0.0
    %v394 = vsub.f32 %v386, %v387
    %v395 = vsub.f32 %v388, %v389
    %v396 = vsub.f32 %v390, %v391
    %v397 = vsub.f32 %v392, %v393
    %v398 = vld [vmem:[%s9] sm:$0xff]
    %v399 = vld [vmem:[%s9 + $0x8] sm:$0xff]
    %v400 = vld [vmem:[%s9 + $0x10] sm:$0xff]
    %v401 = vld [vmem:[%s9 + $0x18] sm:$0xff]
    %403 = vset.pattern.permute.xlu0 0
    %404 = vperm.xlu0 %403, %v398
    %v405 = vpop.permute.xlu0 %404
    %408 = vset.pattern.permute.xlu0 0
    %409 = vperm.xlu0 %408, %v399
    %v410 = vpop.permute.xlu0 %409
    %413 = vset.pattern.permute.xlu0 0
    %414 = vperm.xlu0 %413, %v400
    %v415 = vpop.permute.xlu0 %414
    %418 = vset.pattern.permute.xlu0 0
    %419 = vperm.xlu0 %418, %v401
    %v420 = vpop.permute.xlu0 %419
    %v422 = vmul.f32 %v394, %v405
    %v423 = vmul.f32 %v395, %v410
    %v424 = vmul.f32 %v396, %v415
    %v425 = vmul.f32 %v397, %v420
    %v426 = vadd.f32 %v422, %v423
    %v427 = vadd.f32 %v426, %v424
    %v428 = vadd.f32 %v427, %v425
    %v429 = vrot.slane %v428, 4
    %v430 = vadd.f32 %v428, %v429
    %v431 = vrot.slane %v430, 2
    %v432 = vadd.f32 %v430, %v431
    %v433 = vrot.slane %v432, 1
    %v434 = vadd.f32 %v432, %v433
    %v435 = vld [vmem:[%s2] sm:$0x1]
    %v436 = vunpack.c.l.bf16 %v435
    %v437 = vmul.f32 %v434, %v436
    %438 = vst [vmem:[#allocation2] sm:$0x1] %v437
    // Predicated region
    $region42: #{tpu_custom_call.1} parent=1 // pred_check
      _
    $region43: #{tpu_custom_call.1} parent=1 // pred_check_branch
      %440 = sbr.rel (0) target = $region45
    $region44: #{tpu_custom_call.1} parent=1 // pred_region
      %s442 = ssub.s32 16, 16
      %443 = vsyncadd [#allocation3], %s442
      %s445 = sshll.u32 [#allocation2], 4
      %s446 = int_to_ptr.vmem [resolvable:$true] %s445
      %448 = dma.vmem_to_hbm [thread:$0]  %s446, 16, %s10, [#allocation3]
    $region45: #{tpu_custom_call.1} parent=1 // pred_fallthru
      _
    // Predicated region
    $region46: #{tpu_custom_call.1} parent=1 // pred_check
      _
    $region47: #{tpu_custom_call.1} parent=1 // pred_check_branch
      %450 = sbr.rel (0) target = $region49
    $region48: #{tpu_custom_call.1} parent=1 // pred_region
      %451 = dma.done [#allocation3], 16
    $region49: #{tpu_custom_call.1} parent=1 // pred_fallthru
      _
    %452 = vsyncpa [#allocation3], 1

</llo_original>
